<compile_context>
chip_gen: v7x
topology: tpu7x:2x2x1
jax: 0.10.0
libtpu: 0.0.40
codegen_flags: <defaults>
</compile_context>

<pallas_src>
import jax
import jax.numpy as jnp
from jax import lax
from jax.experimental import pallas as pl
from jax.experimental.pallas import tpu as pltpu


def _rbf_net_kernel(beta_ref, x_ref, c_ref, cc_ref, w_ref, b_ref, o_ref):
    # beta_ref: (1, 1)      SMEM   scalar RBF width parameter
    # x_ref:    (TB, D)     VMEM   streaming batch tile
    # c_ref:    (H, D)      VMEM   resident centers
    # cc_ref:   (1, H)      VMEM   resident ||c||^2 (hoisted out of the loop)
    # w_ref:    (Cp, H)     VMEM   resident fc weight (lane-padded classes)
    # b_ref:    (1, Cp)     VMEM   resident fc bias   (lane-padded)
    # o_ref:    (TB, Cp)    VMEM   output tile (lane-dense store)
    beta = beta_ref[0, 0]

    x = x_ref[...]
    c = c_ref[...]

    # x . c^T on the MXU, contracting dim 1 of both operands in place
    # (no explicit transpose of the (H, D) centers tile).
    xc = lax.dot_general(x, c, (((1,), (1,)), ((), ())),
                         preferred_element_type=jnp.float32)        # (TB, H)

    xf = x.astype(jnp.float32)
    xx = jnp.sum(xf * xf, axis=-1, keepdims=True)                    # (TB, 1)

    # ||x||^2 + ||c||^2 - 2 x.c ; clamp tiny negatives from cancellation.
    dist2 = jnp.maximum(xx + cc_ref[...] - 2.0 * xc, 0.0)            # (TB, H)
    rbf = jnp.exp(-beta * dist2)                                     # EUP

    # rbf . W^T, contracting the shared H dim with W kept in (C, H) layout.
    out = lax.dot_general(rbf.astype(w_ref.dtype), w_ref[...],
                          (((1,), (1,)), ((), ())),
                          preferred_element_type=jnp.float32)        # (TB, Cp)
    o_ref[...] = (out + b_ref[...]).astype(o_ref.dtype)


def _round_up(n, m):
    return ((n + m - 1) // m) * m


def rbf_network_forward(x, centers, beta, fc_weight, fc_bias, *, tile_b=256):
    """x: (B, D), centers: (H, D), beta: scalar, fc_weight: (C, H), fc_bias: (C,)."""
    B, D = x.shape
    H, _ = centers.shape
    C, _ = fc_weight.shape

    # Lane-dense output: pad class dim up to a multiple of 128 so the final
    # store is a full-lane vst instead of a masked partial store.
    C_pad = _round_up(C, 128)
    w_pad = jnp.zeros((C_pad, H), fc_weight.dtype).at[:C, :].set(fc_weight)
    b_pad = jnp.zeros((1, C_pad), jnp.float32).at[0, :C].set(
        fc_bias.astype(jnp.float32))

    # Batch tiling: sublane-aligned tile, pad B so the grid divides exactly.
    tile_b = max(8, min(_round_up(tile_b, 8), _round_up(B, 8)))
    B_pad = _round_up(B, tile_b)
    if B_pad != B:
        x = jnp.zeros((B_pad, D), x.dtype).at[:B, :].set(x)
    grid = (B_pad // tile_b,)

    # Hoist the per-center ||c||^2 reduction out of the per-tile loop.
    cc = jnp.sum(centers.astype(jnp.float32) ** 2, axis=-1).reshape(1, H)

    beta_smem = jnp.asarray(beta, jnp.float32).reshape(1, 1)

    cost = pl.CostEstimate(
        flops=2 * B_pad * H * (D + C_pad),
        transcendentals=B_pad * H,
        bytes_accessed=(x.size * x.dtype.itemsize
                        + centers.size * centers.dtype.itemsize
                        + w_pad.size * w_pad.dtype.itemsize
                        + B_pad * C_pad * 4),
    )

    out = pl.pallas_call(
        _rbf_net_kernel,
        out_shape=jax.ShapeDtypeStruct((B_pad, C_pad), jnp.float32),
        grid_spec=pltpu.PrefetchScalarGridSpec(
            num_scalar_prefetch=0,
            grid=grid,
            in_specs=[
                pl.BlockSpec((1, 1), lambda i: (0, 0),
                             memory_space=pltpu.SMEM),               # beta
                pl.BlockSpec((tile_b, D), lambda i: (i, 0)),          # x tile
                pl.BlockSpec((H, D), lambda i: (0, 0)),               # centers
                pl.BlockSpec((1, H), lambda i: (0, 0)),               # ||c||^2
                pl.BlockSpec((C_pad, H), lambda i: (0, 0)),           # fc weight
                pl.BlockSpec((1, C_pad), lambda i: (0, 0)),           # fc bias
            ],
            out_specs=pl.BlockSpec((tile_b, C_pad), lambda i: (i, 0)),
        ),
        compiler_params=pltpu.CompilerParams(
            dimension_semantics=("parallel",),
        ),
        cost_estimate=cost,
    )(beta_smem, x, centers, cc, w_pad, b_pad)

    return out[:B, :C]


def rbf_network_reference(x, centers, beta, fc_weight, fc_bias):
    """Pure-JAX reference mirroring the PyTorch module semantics."""
    diff = x[:, None, :] - centers[None, :, :]                # (B, H, D)
    dist2 = jnp.sum(diff * diff, axis=2)                      # (B, H)
    rbf = jnp.exp(-beta * dist2)                              # (B, H)
    return rbf @ fc_weight.T + fc_bias                        # (B, C)


if __name__ == "__main__":
    # Small, module-consistent shapes (batch chosen so the grid has >1 step).
    batch = 16
    input_dim = 32
    hidden_neurons = 16
    num_classes = 4

    key = jax.random.PRNGKey(0)
    kx, kc, kw, kb = jax.random.split(key, 4)

    x = jax.random.normal(kx, (batch, input_dim), dtype=jnp.float32)
    # centers_init would normally come from e.g. k-means; deterministic random here.
    centers = jax.random.normal(kc, (hidden_neurons, input_dim), dtype=jnp.float32)
    beta = jnp.float32(1.0)  # nn.Parameter(torch.ones(1))
    # nn.Linear(hidden_neurons, num_classes) init (uniform in +-1/sqrt(H)).
    bound = 1.0 / (hidden_neurons ** 0.5)
    fc_weight = jax.random.uniform(kw, (num_classes, hidden_neurons),
                                   minval=-bound, maxval=bound, dtype=jnp.float32)
    fc_bias = jax.random.uniform(kb, (num_classes,),
                                 minval=-bound, maxval=bound, dtype=jnp.float32)

    out = rbf_network_forward(x, centers, beta, fc_weight, fc_bias, tile_b=8)
    out = jax.block_until_ready(out)

    ref = rbf_network_reference(x, centers, beta, fc_weight, fc_bias)
    assert out.shape == (batch, num_classes)
    assert jnp.allclose(out, ref, atol=1e-5, rtol=1e-5), "mismatch vs reference"

    print("KERNEL_OK")
</pallas_src>

<mosaic_0001>
module attributes {stable_mosaic.version = 11 : i64} {
  func.func @_rbf_net_kernel(%arg0: i32, %arg1: memref<1x1xf32, #tpu.memory_space<smem>>, %arg2: memref<8x32xf32, #tpu.memory_space<vmem>>, %arg3: memref<16x32xf32, #tpu.memory_space<vmem>>, %arg4: memref<1x16xf32, #tpu.memory_space<vmem>>, %arg5: memref<128x16xf32, #tpu.memory_space<vmem>>, %arg6: memref<1x128xf32, #tpu.memory_space<vmem>>, %arg7: memref<8x128xf32, #tpu.memory_space<vmem>>) attributes {dimension_semantics = [#tpu.dimension_semantics<parallel>], iteration_bounds = array<i64: 2>, scalar_prefetch = 0 : i64, scratch_operands = 0 : i64, tpu.core_type = #tpu.core_type<tc>, window_params = [{transform_indices = @transform_0, window_bounds = array<i64: 1, 1>}, {transform_indices = @transform_1, window_bounds = array<i64: 8, 32>}, {pipeline_mode = #tpu.pipeline_mode<synchronous>, transform_indices = @transform_2, window_bounds = array<i64: 16, 32>}, {pipeline_mode = #tpu.pipeline_mode<synchronous>, transform_indices = @transform_3, window_bounds = array<i64: 1, 16>}, {pipeline_mode = #tpu.pipeline_mode<synchronous>, transform_indices = @transform_4, window_bounds = array<i64: 128, 16>}, {pipeline_mode = #tpu.pipeline_mode<synchronous>, transform_indices = @transform_5, window_bounds = array<i64: 1, 128>}, {transform_indices = @transform_6, window_bounds = array<i64: 8, 128>}]} {
    %c0 = arith.constant 0 : index
    %c0_0 = arith.constant 0 : index
    %0 = memref.load %arg1[%c0, %c0_0] : memref<1x1xf32, #tpu.memory_space<smem>>
    %c0_1 = arith.constant 0 : index
    %c0_2 = arith.constant 0 : index
    %1 = vector.load %arg2[%c0_1, %c0_2] : memref<8x32xf32, #tpu.memory_space<vmem>>, vector<8x32xf32>
    %c0_3 = arith.constant 0 : index
    %c0_4 = arith.constant 0 : index
    %2 = vector.load %arg3[%c0_3, %c0_4] : memref<16x32xf32, #tpu.memory_space<vmem>>, vector<16x32xf32>
    %cst = arith.constant dense<0.000000e+00> : vector<8x16xf32>
    %3 = tpu.matmul %1, %2, %cst {dimension_numbers = #tpu.dot_dimension_numbers<[1], [1], [0], [0], [0, 0, 1, 0], [], []>} : vector<8x32xf32>, vector<16x32xf32>, vector<8x16xf32> -> vector<8x16xf32>
    %4 = arith.mulf %1, %1 : vector<8x32xf32>
    %cst_5 = arith.constant dense<0.000000e+00> : vector<8xf32>
    %5 = vector.multi_reduction <add>, %4, %cst_5 [1] : vector<8x32xf32> to vector<8xf32>
    %6 = vector.shape_cast %5 : vector<8xf32> to vector<8x1xf32>
    %c0_6 = arith.constant 0 : index
    %c0_7 = arith.constant 0 : index
    %7 = vector.load %arg4[%c0_6, %c0_7] : memref<1x16xf32, #tpu.memory_space<vmem>>, vector<1x16xf32>
    %8 = vector.broadcast %6 : vector<8x1xf32> to vector<8x16xf32>
    %9 = vector.broadcast %7 : vector<1x16xf32> to vector<8x16xf32>
    %10 = arith.addf %8, %9 : vector<8x16xf32>
    %cst_8 = arith.constant 2.000000e+00 : f32
    %11 = vector.broadcast %cst_8 : f32 to vector<8x16xf32>
    %12 = arith.mulf %11, %3 : vector<8x16xf32>
    %13 = arith.subf %10, %12 : vector<8x16xf32>
    %cst_9 = arith.constant 0.000000e+00 : f32
    %14 = vector.broadcast %cst_9 : f32 to vector<8x16xf32>
    %15 = arith.maximumf %13, %14 : vector<8x16xf32>
    %cst_10 = arith.constant 0.000000e+00 : f32
    %16 = arith.subf %cst_10, %0 : f32
    %17 = vector.broadcast %16 : f32 to vector<8x16xf32>
    %18 = arith.mulf %17, %15 : vector<8x16xf32>
    %19 = math.exp %18 : vector<8x16xf32>
    %c0_11 = arith.constant 0 : index
    %c0_12 = arith.constant 0 : index
    %20 = vector.load %arg5[%c0_11, %c0_12] : memref<128x16xf32, #tpu.memory_space<vmem>>, vector<128x16xf32>
    %cst_13 = arith.constant dense<0.000000e+00> : vector<8x128xf32>
    %21 = tpu.matmul %19, %20, %cst_13 {dimension_numbers = #tpu.dot_dimension_numbers<[1], [1], [0], [0], [0, 0, 1, 0], [], []>} : vector<8x16xf32>, vector<128x16xf32>, vector<8x128xf32> -> vector<8x128xf32>
    %c0_14 = arith.constant 0 : index
    %c0_15 = arith.constant 0 : index
    %22 = vector.load %arg6[%c0_14, %c0_15] : memref<1x128xf32, #tpu.memory_space<vmem>>, vector<1x128xf32>
    %23 = vector.broadcast %22 : vector<1x128xf32> to vector<8x128xf32>
    %24 = arith.addf %21, %23 : vector<8x128xf32>
    %c0_16 = arith.constant 0 : index
    %c0_17 = arith.constant 0 : index
    %25 = vector.load %arg7[%c0_16, %c0_17] : memref<8x128xf32, #tpu.memory_space<vmem>>, vector<8x128xf32>
    tpu.vector_store %arg7[%c0_16, %c0_17], %24 {strides = array<i32>} : memref<8x128xf32, #tpu.memory_space<vmem>>, vector<8x128xf32>,
    return
  }
  func.func @transform_0(%arg0: i32) -> (i32, i32) {
    %c0_i32 = arith.constant 0 : i32
    %c0_i32_0 = arith.constant 0 : i32
    %c0_i32_1 = arith.constant 0 : i32
    return %c0_i32, %c0_i32_0 : i32, i32
  }
  func.func @transform_1(%arg0: i32) -> (i32, i32) {
    %c0_i32 = arith.constant 0 : i32
    %c0_i32_0 = arith.constant 0 : i32
    return %arg0, %c0_i32 : i32, i32
  }
  func.func @transform_2(%arg0: i32) -> (i32, i32) {
    %c0_i32 = arith.constant 0 : i32
    %c0_i32_0 = arith.constant 0 : i32
    %c0_i32_1 = arith.constant 0 : i32
    return %c0_i32, %c0_i32_0 : i32, i32
  }
  func.func @transform_3(%arg0: i32) -> (i32, i32) {
    %c0_i32 = arith.constant 0 : i32
    %c0_i32_0 = arith.constant 0 : i32
    %c0_i32_1 = arith.constant 0 : i32
    return %c0_i32, %c0_i32_0 : i32, i32
  }
  func.func @transform_4(%arg0: i32) -> (i32, i32) {
    %c0_i32 = arith.constant 0 : i32
    %c0_i32_0 = arith.constant 0 : i32
    %c0_i32_1 = arith.constant 0 : i32
    return %c0_i32, %c0_i32_0 : i32, i32
  }
  func.func @transform_5(%arg0: i32) -> (i32, i32) {
    %c0_i32 = arith.constant 0 : i32
    %c0_i32_0 = arith.constant 0 : i32
    %c0_i32_1 = arith.constant 0 : i32
    return %c0_i32, %c0_i32_0 : i32, i32
  }
  func.func @transform_6(%arg0: i32) -> (i32, i32) {
    %c0_i32 = arith.constant 0 : i32
    %c0_i32_0 = arith.constant 0 : i32
    return %arg0, %c0_i32 : i32, i32
  }
}

</mosaic_0001>

<llo_original>
// kernel: tpu_custom_call.1
$region0: #{tpu_custom_call.1}
  #allocation0 [shape = 'u32[]', space=smem, size = 0x4, offset = 0x4, fixed_abs, tag = 'smem constant byte address 0x4 - core index']
  #allocation1 [shape = 'u32[144,128]{1,0:T(1,128)}', space=vmem, size = 0x12000, scoped, tag = 'internal scratch']
  #allocation2 [shape = 'f32[1,1]{1,0:T(1,128)S(6)}', space=smem, size = 0x200, scoped, tag = 'scoped memory for tpu_custom_call.1']
  %s0 = inlined_call_operand.<no memory space> [shape: f32[1,1], index: 0, kind: input, shape index: {}]
  %s1 = inlined_call_operand.vmem [shape: f32[16,32], index: 1, kind: input, shape index: {}]
  %s2 = inlined_call_operand.vmem [shape: f32[16,32], index: 2, kind: input, shape index: {}]
  %s3 = inlined_call_operand.vmem [shape: f32[1,16], index: 3, kind: input, shape index: {}]
  %s4 = inlined_call_operand.vmem [shape: f32[128,16], index: 4, kind: input, shape index: {}]
  %s5 = inlined_call_operand.vmem [shape: f32[1,128], index: 5, kind: input, shape index: {}]
  %s6 = inlined_call_operand.hbm [shape: f32[16,128], index: 6, kind: output, shape index: {}]
  %s7 = sld [smem:[#allocation0]]
  $region57: #{tpu_custom_call.1} parent=0
    _
  %s9 = ssub.s32 1, %s7
  %s10 = scalar_select 0, %s9, %s7
  %11 = sst [smem:[#allocation2]] %s0
  $region1: #{tpu_custom_call.1} parent=0
    #allocation3 [shape = 'u8[8192]{0}', space=vmem, size = 0x2000, scoped, tag = 'output window, operand 0']
    #allocation4 [shape = 's32[2]{0}', space=sflag, size = 0x8, scoped, tag = 'scoped memory for tpu_custom_call.1']
    %12 = vsyncpa [#allocation4], 0
    %s13 = scalar_lea.sflag [#allocation4], 1
    %14 = vsyncpa %s13, 0
    loop: start=0, step=1, limit=4
    $region2: #{tpu_custom_call.1} parent=1 // loop_pre_header
      _
    $region3: #{tpu_custom_call.1} parent=1 // loop_header
      %s16 = sphi 0, %s20
      %p17 = scmp.ge.s32.totalorder %s16, 4
      %s24 = sphi 0, %s24
      %s26 = sphi 0, %s24
      %s27 = sphi 0, %s26
      %s41 = sphi 0, %s27
      %s47 = sphi 0, %s49
      %s50 = sphi 0, %s47
      %s51 = sphi 0, %s50
      %s67 = sphi 0, %s51
      %s71 = sphi 0, %s71
      %s73 = sphi 0, %s71
      %s74 = sphi 0, %s73
      %s88 = sphi 0, %s74
      %s92 = sphi 0, %s92
      %s94 = sphi 0, %s92
      %s95 = sphi 0, %s94
      %s109 = sphi 0, %s95
      %s113 = sphi 0, %s113
      %s115 = sphi 0, %s113
      %s116 = sphi 0, %s115
      %s130 = sphi 0, %s116
      %s134 = sphi 0, %s134
      %s136 = sphi 0, %s134
      %s137 = sphi 0, %s136
      %s151 = sphi 0, %s137
      %s157 = sphi 0, %s159
      %s160 = sphi 0, %s157
      %s161 = sphi 0, %s160
      %s177 = sphi 0, %s161
    $region4: #{tpu_custom_call.1} parent=1 // loop_header_branch
      %19 = sbr.rel (%p17) target = $region8
    $region5: #{tpu_custom_call.1} parent=1 // loop_body
      %s21 = ssub.s32 %s16, 1
      %s22 = ssub.s32 %s16, 2
      %s23 = sadd.s32 %s16, 1
      %s25 = sadd.s32 %s24, 1
      %p28 = scmp.eq.s32.totalorder %s16, 1
      %p29 = scmp.ne.s32.totalorder %s24, %s26
      %p30 = scmp.eq.s32.totalorder %s16, 0
      %p31 = por %p29, %p30
      %p32 = scmp.ne.s32.totalorder %s24, %s26
      %p33 = scmp.eq.s32.totalorder %s21, 1
      %p34 = por %p32, %p33
      %p35 = scmp.ne.s32.totalorder %s26, %s27
      %p36 = scmp.eq.s32.totalorder %s21, 0
      %p37 = por %p35, %p36
      %p38 = scmp.ne.s32.totalorder %s26, %s27
      %p39 = scmp.eq.s32.totalorder %s22, 1
      %p40 = por %p38, %p39
      %p42 = scmp.ne.s32.totalorder %s27, %s41
      %p43 = scmp.eq.s32.totalorder %s22, 0
      %p44 = por %p42, %p43
      %s45 = ssub.s32 %s16, %s23
      %p46 = scmp.eq.s32.totalorder %s45, 0
      %s48 = sadd.s32 %s47, 1
      %s49 = scalar_select %p46, %s47, %s48
      %p52 = pneg %p46
      %p53 = scmp.eq.s32.totalorder %s16, 1
      %p54 = por %p52, %p53
      %p55 = scmp.ne.s32.totalorder %s47, %s50
      %p56 = scmp.eq.s32.totalorder %s16, 0
      %p57 = por %p55, %p56
      %p58 = scmp.ne.s32.totalorder %s47, %s50
      %p59 = scmp.eq.s32.totalorder %s21, 1
      %p60 = por %p58, %p59
      %p61 = scmp.ne.s32.totalorder %s50, %s51
      %p62 = scmp.eq.s32.totalorder %s21, 0
      %p63 = por %p61, %p62
      %p64 = scmp.ne.s32.totalorder %s50, %s51
      %p65 = scmp.eq.s32.totalorder %s22, 1
      %p66 = por %p64, %p65
      %p68 = scmp.ne.s32.totalorder %s51, %s67
      %p69 = scmp.eq.s32.totalorder %s22, 0
      %p70 = por %p68, %p69
      %s72 = sadd.s32 %s71, 1
      %p75 = scmp.eq.s32.totalorder %s16, 1
      %p76 = scmp.ne.s32.totalorder %s71, %s73
      %p77 = scmp.eq.s32.totalorder %s16, 0
      %p78 = por %p76, %p77
      %p79 = scmp.ne.s32.totalorder %s71, %s73
      %p80 = scmp.eq.s32.totalorder %s21, 1
      %p81 = por %p79, %p80
      %p82 = scmp.ne.s32.totalorder %s73, %s74
      %p83 = scmp.eq.s32.totalorder %s21, 0
      %p84 = por %p82, %p83
      %p85 = scmp.ne.s32.totalorder %s73, %s74
      %p86 = scmp.eq.s32.totalorder %s22, 1
      %p87 = por %p85, %p86
      %p89 = scmp.ne.s32.totalorder %s74, %s88
      %p90 = scmp.eq.s32.totalorder %s22, 0
      %p91 = por %p89, %p90
      %s93 = sadd.s32 %s92, 1
      %p96 = scmp.eq.s32.totalorder %s16, 1
      %p97 = scmp.ne.s32.totalorder %s92, %s94
      %p98 = scmp.eq.s32.totalorder %s16, 0
      %p99 = por %p97, %p98
      %p100 = scmp.ne.s32.totalorder %s92, %s94
      %p101 = scmp.eq.s32.totalorder %s21, 1
      %p102 = por %p100, %p101
      %p103 = scmp.ne.s32.totalorder %s94, %s95
      %p104 = scmp.eq.s32.totalorder %s21, 0
      %p105 = por %p103, %p104
      %p106 = scmp.ne.s32.totalorder %s94, %s95
      %p107 = scmp.eq.s32.totalorder %s22, 1
      %p108 = por %p106, %p107
      %p110 = scmp.ne.s32.totalorder %s95, %s109
      %p111 = scmp.eq.s32.totalorder %s22, 0
      %p112 = por %p110, %p111
      %s114 = sadd.s32 %s113, 1
      %p117 = scmp.eq.s32.totalorder %s16, 1
      %p118 = scmp.ne.s32.totalorder %s113, %s115
      %p119 = scmp.eq.s32.totalorder %s16, 0
      %p120 = por %p118, %p119
      %p121 = scmp.ne.s32.totalorder %s113, %s115
      %p122 = scmp.eq.s32.totalorder %s21, 1
      %p123 = por %p121, %p122
      %p124 = scmp.ne.s32.totalorder %s115, %s116
      %p125 = scmp.eq.s32.totalorder %s21, 0
      %p126 = por %p124, %p125
      %p127 = scmp.ne.s32.totalorder %s115, %s116
      %p128 = scmp.eq.s32.totalorder %s22, 1
      %p129 = por %p127, %p128
      %p131 = scmp.ne.s32.totalorder %s116, %s130
      %p132 = scmp.eq.s32.totalorder %s22, 0
      %p133 = por %p131, %p132
      %s135 = sadd.s32 %s134, 1
      %p138 = scmp.eq.s32.totalorder %s16, 1
      %p139 = scmp.ne.s32.totalorder %s134, %s136
      %p140 = scmp.eq.s32.totalorder %s16, 0
      %p141 = por %p139, %p140
      %p142 = scmp.ne.s32.totalorder %s134, %s136
      %p143 = scmp.eq.s32.totalorder %s21, 1
      %p144 = por %p142, %p143
      %p145 = scmp.ne.s32.totalorder %s136, %s137
      %p146 = scmp.eq.s32.totalorder %s21, 0
      %p147 = por %p145, %p146
      %p148 = scmp.ne.s32.totalorder %s136, %s137
      %p149 = scmp.eq.s32.totalorder %s22, 1
      %p150 = por %p148, %p149
      %p152 = scmp.ne.s32.totalorder %s137, %s151
      %p153 = scmp.eq.s32.totalorder %s22, 0
      %p154 = por %p152, %p153
      %s155 = ssub.s32 %s16, %s23
      %p156 = scmp.eq.s32.totalorder %s155, 0
      %s158 = sadd.s32 %s157, 1
      %s159 = scalar_select %p156, %s157, %s158
      %p162 = pneg %p156
      %p163 = scmp.eq.s32.totalorder %s16, 1
      %p164 = por %p162, %p163
      %p165 = scmp.ne.s32.totalorder %s157, %s160
      %p166 = scmp.eq.s32.totalorder %s16, 0
      %p167 = por %p165, %p166
      %p168 = scmp.ne.s32.totalorder %s157, %s160
      %p169 = scmp.eq.s32.totalorder %s21, 1
      %p170 = por %p168, %p169
      %p171 = scmp.ne.s32.totalorder %s160, %s161
      %p172 = scmp.eq.s32.totalorder %s21, 0
      %p173 = por %p171, %p172
      %p174 = scmp.ne.s32.totalorder %s160, %s161
      %p175 = scmp.eq.s32.totalorder %s22, 1
      %p176 = por %p174, %p175
      %p178 = scmp.ne.s32.totalorder %s161, %s177
      %p179 = scmp.eq.s32.totalorder %s22, 0
      %p180 = por %p178, %p179
      %p181 = scmp.le.s32.totalorder 1, %s16
      %p182 = scmp.lt.s32.totalorder %s16, 3
      %p183 = pnand %p181, %p182
      %p184 = pneg %p183
      // Predicated region
      $region9: #{tpu_custom_call.1} parent=5 // pred_check
        _
      $region10: #{tpu_custom_call.1} parent=5 // pred_check_branch
        %186 = sbr.rel (%p183) target = $region12
      $region11: #{tpu_custom_call.1} parent=5 // pred_region
        %s187 = ssub.s32 %s16, 1
        // Predicated region
        $region13: #{tpu_custom_call.1} parent=11 // pred_check
          %p188 = pneg %p37
        $region14: #{tpu_custom_call.1} parent=11 // pred_check_branch
          %190 = sbr.rel (%p188) target = $region16
        $region15: #{tpu_custom_call.1} parent=11 // pred_region
          _
        $region16: #{tpu_custom_call.1} parent=11 // pred_fallthru
          _
        // Predicated region
        $region17: #{tpu_custom_call.1} parent=11 // pred_check
          %p191 = pneg %p84
        $region18: #{tpu_custom_call.1} parent=11 // pred_check_branch
          %193 = sbr.rel (%p191) target = $region20
        $region19: #{tpu_custom_call.1} parent=11 // pred_region
          _
        $region20: #{tpu_custom_call.1} parent=11 // pred_fallthru
          _
        // Predicated region
        $region21: #{tpu_custom_call.1} parent=11 // pred_check
          %p194 = pneg %p105
        $region22: #{tpu_custom_call.1} parent=11 // pred_check_branch
          %196 = sbr.rel (%p194) target = $region24
        $region23: #{tpu_custom_call.1} parent=11 // pred_region
          _
        $region24: #{tpu_custom_call.1} parent=11 // pred_fallthru
          _
        // Predicated region
        $region25: #{tpu_custom_call.1} parent=11 // pred_check
          %p197 = pneg %p126
        $region26: #{tpu_custom_call.1} parent=11 // pred_check_branch
          %199 = sbr.rel (%p197) target = $region28
        $region27: #{tpu_custom_call.1} parent=11 // pred_region
          _
        $region28: #{tpu_custom_call.1} parent=11 // pred_fallthru
          _
        // Predicated region
        $region29: #{tpu_custom_call.1} parent=11 // pred_check
          %p200 = pneg %p147
        $region30: #{tpu_custom_call.1} parent=11 // pred_check_branch
          %202 = sbr.rel (%p200) target = $region32
        $region31: #{tpu_custom_call.1} parent=11 // pred_region
          _
        $region32: #{tpu_custom_call.1} parent=11 // pred_fallthru
          _
      $region12: #{tpu_custom_call.1} parent=5 // pred_fallthru
        _
      %p203 = scmp.lt.s32.totalorder %s16, 2
      // Predicated region
      $region33: #{tpu_custom_call.1} parent=5 // pred_check
        %p204 = pneg %p203
      $region34: #{tpu_custom_call.1} parent=5 // pred_check_branch
        %206 = sbr.rel (%p204) target = $region36
      $region35: #{tpu_custom_call.1} parent=5 // pred_region
        // Predicated region
        $region37: #{tpu_custom_call.1} parent=35 // pred_check
          %p207 = pneg %p57
        $region38: #{tpu_custom_call.1} parent=35 // pred_check_branch
          %209 = sbr.rel (%p207) target = $region40
        $region39: #{tpu_custom_call.1} parent=35 // pred_region
          %p210 = scmp.lt.s32.totalorder %s16, 1
          %s211 = scalar_select %p210, %s16, 1
          %s212 = smul.addr %s211, 8
          %s213 = scalar_lea.vmem %s1, %s212
        $region40: #{tpu_custom_call.1} parent=35 // pred_fallthru
          _
      $region36: #{tpu_custom_call.1} parent=5 // pred_fallthru
        _
      %p214 = scmp.le.s32.totalorder 1, %s16
      %p215 = scmp.lt.s32.totalorder %s16, 3
      %p216 = pnand %p214, %p215
      %p217 = pneg %p216
      // Predicated region
      $region41: #{tpu_custom_call.1} parent=5 // pred_check
        _
      $region42: #{tpu_custom_call.1} parent=5 // pred_check_branch
        %219 = sbr.rel (%p216) target = $region44
      $region43: #{tpu_custom_call.1} parent=5 // pred_region
        %s220 = ssub.s32 %s16, 1
        %p221 = pneg %p37
        %p222 = pneg %p34
        %p223 = scmp.lt.s32.totalorder %s21, 1
        %s224 = scalar_select %p223, %s21, 1
        %s225 = smul.addr %s224, 8
        %s226 = scalar_lea.vmem %s1, %s225
        %p227 = pneg %p63
        %p228 = pneg %p60
        %p229 = pneg %p84
        %p230 = pneg %p81
        %p231 = pneg %p105
        %p232 = pneg %p102
        %p233 = pneg %p126
        %p234 = pneg %p123
        %p235 = pneg %p147
        %p236 = pneg %p144
        %p237 = pneg %p173
        %p238 = pneg %p170
        %s239 = sand.u32 %s160, 1
        %s240 = scalar_lea.sflag [#allocation4], %s239
        %s241 = sand.u32 %s160, 1
        %s242 = smul.addr %s241, 8
        %s243 = scalar_lea.vmem [#allocation3], %s242
        %p244 = scmp.lt.s32.totalorder %s21, 1
        %s245 = scalar_select %p244, %s21, 1
        %s246 = smul.addr %s245, 8
        %s247 = scalar_lea.vmem %s1, %s246
        %s248 = sld [smem:[#allocation2]]
        %v249 = vld [vmem:[%s247] sm:$0xff]
        %v250 = vld [vmem:[%s2] sm:$0xff]
        %v251 = vld [vmem:[%s2 + $0x8] sm:$0xff]
        %vm252 = vcmask 261120
        %v254 = vsel %vm252, %v249, 0
        %v257 = vsel %vm252, %v250, 0
        %v260 = vsel %vm252, %v251, 0
        %262 = vmatprep.subr.mxu0 0.0
        %263 = vmatpush1.xpose.msra.mxu0 %v257
        %264 = vmatprep.subr.mxu0 0.0
        %265 = vmatpush1.xpose.msra.mxu0 %v260
        %266 = vmatprep.subr.mxu0 0.0
        %267 = vmatpush1.xpose.msra.mxu0 0.0
        %268 = vmatprep.subr.mxu0 0.0
        %269 = vmatpush1.xpose.msra.mxu0 0.0
        %270 = vmatprep.subr.mxu0 0.0
        %271 = vmatpush1.xpose.msra.mxu0 0.0
        %272 = vmatprep.subr.mxu0 0.0
        %273 = vmatpush1.xpose.msra.mxu0 0.0
        %274 = vmatprep.subr.mxu0 0.0
        %275 = vmatpush1.xpose.msra.mxu0 0.0
        %276 = vmatprep.subr.mxu0 0.0
        %277 = vmatpush1.xpose.msra.mxu0 0.0
        %278 = vmatprep.subr.mxu0 0.0
        %279 = vmatpush1.xpose.msra.mxu0 0.0
        %280 = vmatprep.subr.mxu0 0.0
        %281 = vmatpush1.xpose.msra.mxu0 0.0
        %282 = vmatprep.subr.mxu0 0.0
        %283 = vmatpush1.xpose.msra.mxu0 0.0
        %284 = vmatprep.subr.mxu0 0.0
        %285 = vmatpush1.xpose.msra.mxu0 0.0
        %286 = vmatprep.subr.mxu0 0.0
        %287 = vmatpush1.xpose.msra.mxu0 0.0
        %288 = vmatprep.subr.mxu0 0.0
        %289 = vmatpush1.xpose.msra.mxu0 0.0
        %290 = vmatprep.subr.mxu0 0.0
        %291 = vmatpush1.xpose.msra.mxu0 0.0
        %292 = vmatprep.subr.mxu0 0.0
        %293 = vmatpush1.xpose.msra.mxu0 0.0
        %294 = vmatprep.subr.mxu0 0.0
        %295 = vmatpush1.xpose.msra.mxu0 0.0
        %296 = vmatprep.subr.mxu0 0.0
        %297 = vmatpush1.xpose.msra.mxu0 0.0
        %298 = vmatprep.subr.mxu0 0.0
        %299 = vmatpush1.xpose.msra.mxu0 0.0
        %300 = vmatprep.subr.mxu0 0.0
        %301 = vmatpush1.xpose.msra.mxu0 0.0
        %302 = vmatprep.subr.mxu0 0.0
        %303 = vmatpush1.xpose.msra.mxu0 0.0
        %304 = vmatprep.subr.mxu0 0.0
        %305 = vmatpush1.xpose.msra.mxu0 0.0
        %306 = vmatprep.subr.mxu0 0.0
        %307 = vmatpush1.xpose.msra.mxu0 0.0
        %308 = vmatprep.subr.mxu0 0.0
        %309 = vmatpush1.xpose.msra.mxu0 0.0
        %310 = vmatprep.subr.mxu0 0.0
        %311 = vmatpush1.xpose.msra.mxu0 0.0
        %312 = vmatprep.subr.mxu0 0.0
        %313 = vmatpush1.xpose.msra.mxu0 0.0
        %314 = vmatprep.subr.mxu0 0.0
        %315 = vmatpush1.xpose.msra.mxu0 0.0
        %316 = vmatprep.subr.mxu0 0.0
        %317 = vmatpush1.xpose.msra.mxu0 0.0
        %318 = vmatprep.subr.mxu0 0.0
        %319 = vmatpush1.xpose.msra.mxu0 0.0
        %320 = vmatprep.subr.mxu0 0.0
        %321 = vmatpush1.xpose.msra.mxu0 0.0
        %322 = vmatprep.subr.mxu0 0.0
        %323 = vmatpush1.xpose.msra.mxu0 0.0
        %324 = vmatprep.subr.mxu0 0.0
        %325 = vmatpush1.xpose.msra.mxu0 0.0
        %326 = vmatprep.mubr.f32.mxu0 0.0
        %327 = vmatmul.mubr.f32.gmra.mrb[0].mxu0 %v254
        %v328 = vpop.f32.mrb[0].mxu0
        %v329 = vadd.f32 0.0, %v328
        %v330 = vpop.f32.mrb[0].mxu0
        %331 = vdwg.mxu0
        %v332 = vmul.f32 %v249, %v249
        %v333 = vsel %vm252, %v332, 0.0
        %334 = vadd.xlane.f32.xlu0 %v333
        %v335 = vpop.xlane.xlu0 %334
        %v336 = vld [vmem:[%s3] sm:$0x1]
        %v338 = vlaneseq
        %v339 = vshrl.u32 %v338, 7
        %v340 = vsub.s32 0, %v339
        %v341 = vrot.slane %v336, %v340
        %v343 = vadd.f32 %v335, %v341
        %v344 = vmul.f32 %v329, 2.0
        %v345 = vsub.f32 %v343, %v344
        %v346 = vmax.f32 %v345, 0.0
        %s347 = ssub.f32 0.0, %s248
        %v348 = vstv %s347
        %v349 = vmul.f32 %v348, %v346
        %v350 = vmul.f32 %v349, 1.442695
        %v351 = vpow.pop %v350
        %v352 = vld [vmem:[%s4] sm:$0xff]
        %v353 = vld [vmem:[%s4 + $0x8] sm:$0xff]
        %v354 = vld [vmem:[%s4 + $0x10] sm:$0xff]
        %v355 = vld [vmem:[%s4 + $0x18] sm:$0xff]
        %v356 = vld [vmem:[%s4 + $0x20] sm:$0xff]
        %v357 = vld [vmem:[%s4 + $0x28] sm:$0xff]
        %v358 = vld [vmem:[%s4 + $0x30] sm:$0xff]
        %v359 = vld [vmem:[%s4 + $0x38] sm:$0xff]
        %v360 = vld [vmem:[%s4 + $0x40] sm:$0xff]
        %v361 = vld [vmem:[%s4 + $0x48] sm:$0xff]
        %v362 = vld [vmem:[%s4 + $0x50] sm:$0xff]
        %v363 = vld [vmem:[%s4 + $0x58] sm:$0xff]
        %v364 = vld [vmem:[%s4 + $0x60] sm:$0xff]
        %v365 = vld [vmem:[%s4 + $0x68] sm:$0xff]
        %v366 = vld [vmem:[%s4 + $0x70] sm:$0xff]
        %v367 = vld [vmem:[%s4 + $0x78] sm:$0xff]
        %v368 = vld [vmem:[%s5] sm:$0x1]
        %v370 = vlaneseq
        %v371 = vshrl.u32 %v370, 7
        %v372 = vsub.s32 0, %v371
        %v373 = vrot.slane %v368, %v372
        %vm375 = vcmask 130048
        %v377 = vsel %vm375, %v351, 0
        %v380 = vsel %vm375, %v352, 0
        %v383 = vsel %vm375, %v353, 0
        %v386 = vsel %vm375, %v354, 0
        %v389 = vsel %vm375, %v355, 0
        %v392 = vsel %vm375, %v356, 0
        %v395 = vsel %vm375, %v357, 0
        %v398 = vsel %vm375, %v358, 0
        %v401 = vsel %vm375, %v359, 0
        %v404 = vsel %vm375, %v360, 0
        %v407 = vsel %vm375, %v361, 0
        %v410 = vsel %vm375, %v362, 0
        %v413 = vsel %vm375, %v363, 0
        %v416 = vsel %vm375, %v364, 0
        %v419 = vsel %vm375, %v365, 0
        %v422 = vsel %vm375, %v366, 0
        %v425 = vsel %vm375, %v367, 0
        %427 = vmatprep.subr.mxu0 0.0
        %428 = vmatpush1.xpose.msra.mxu0 %v380
        %429 = vmatprep.subr.mxu0 0.0
        %430 = vmatpush1.xpose.msra.mxu0 %v383
        %431 = vmatprep.subr.mxu0 0.0
        %432 = vmatpush1.xpose.msra.mxu0 %v386
        %433 = vmatprep.subr.mxu0 0.0
        %434 = vmatpush1.xpose.msra.mxu0 %v389
        %435 = vmatprep.subr.mxu0 0.0
        %436 = vmatpush1.xpose.msra.mxu0 %v392
        %437 = vmatprep.subr.mxu0 0.0
        %438 = vmatpush1.xpose.msra.mxu0 %v395
        %439 = vmatprep.subr.mxu0 0.0
        %440 = vmatpush1.xpose.msra.mxu0 %v398
        %441 = vmatprep.subr.mxu0 0.0
        %442 = vmatpush1.xpose.msra.mxu0 %v401
        %443 = vmatprep.subr.mxu0 0.0
        %444 = vmatpush1.xpose.msra.mxu0 %v404
        %445 = vmatprep.subr.mxu0 0.0
        %446 = vmatpush1.xpose.msra.mxu0 %v407
        %447 = vmatprep.subr.mxu0 0.0
        %448 = vmatpush1.xpose.msra.mxu0 %v410
        %449 = vmatprep.subr.mxu0 0.0
        %450 = vmatpush1.xpose.msra.mxu0 %v413
        %451 = vmatprep.subr.mxu0 0.0
        %452 = vmatpush1.xpose.msra.mxu0 %v416
        %453 = vmatprep.subr.mxu0 0.0
        %454 = vmatpush1.xpose.msra.mxu0 %v419
        %455 = vmatprep.subr.mxu0 0.0
        %456 = vmatpush1.xpose.msra.mxu0 %v422
        %457 = vmatprep.subr.mxu0 0.0
        %458 = vmatpush1.xpose.msra.mxu0 %v425
        %459 = vmatprep.subr.mxu0 0.0
        %460 = vmatpush1.xpose.msra.mxu0 0.0
        %461 = vmatprep.subr.mxu0 0.0
        %462 = vmatpush1.xpose.msra.mxu0 0.0
        %463 = vmatprep.subr.mxu0 0.0
        %464 = vmatpush1.xpose.msra.mxu0 0.0
        %465 = vmatprep.subr.mxu0 0.0
        %466 = vmatpush1.xpose.msra.mxu0 0.0
        %467 = vmatprep.subr.mxu0 0.0
        %468 = vmatpush1.xpose.msra.mxu0 0.0
        %469 = vmatprep.subr.mxu0 0.0
        %470 = vmatpush1.xpose.msra.mxu0 0.0
        %471 = vmatprep.subr.mxu0 0.0
        %472 = vmatpush1.xpose.msra.mxu0 0.0
        %473 = vmatprep.subr.mxu0 0.0
        %474 = vmatpush1.xpose.msra.mxu0 0.0
        %475 = vmatprep.subr.mxu0 0.0
        %476 = vmatpush1.xpose.msra.mxu0 0.0
        %477 = vmatprep.subr.mxu0 0.0
        %478 = vmatpush1.xpose.msra.mxu0 0.0
        %479 = vmatprep.subr.mxu0 0.0
        %480 = vmatpush1.xpose.msra.mxu0 0.0
        %481 = vmatprep.subr.mxu0 0.0
        %482 = vmatpush1.xpose.msra.mxu0 0.0
        %483 = vmatprep.subr.mxu0 0.0
        %484 = vmatpush1.xpose.msra.mxu0 0.0
        %485 = vmatprep.subr.mxu0 0.0
        %486 = vmatpush1.xpose.msra.mxu0 0.0
        %487 = vmatprep.subr.mxu0 0.0
        %488 = vmatpush1.xpose.msra.mxu0 0.0
        %489 = vmatprep.subr.mxu0 0.0
        %490 = vmatpush1.xpose.msra.mxu0 0.0
        %491 = vmatprep.mubr.f32.mxu0 0.0
        %492 = vmatmul.mubr.f32.gmra.mrb[0].mxu0 %v377
        %v493 = vpop.f32.mrb[0].mxu0
        %v494 = vadd.f32 %v373, %v493
        %v495 = vpop.f32.mrb[0].mxu0
        %496 = vdwg.mxu0
        %497 = vst [vmem:[%s243] sm:$0xff] %v494
        %s498 = sand.u32 %s160, 1
        %s499 = scalar_lea.sflag [#allocation4], %s498
        %s500 = sand.u32 %s160, 1
        %s501 = smul.addr %s500, 8
        %s502 = scalar_lea.vmem [#allocation3], %s501
        // Predicated region
        $region45: #{tpu_custom_call.1} parent=43 // pred_check
          %p503 = pneg %p170
        $region46: #{tpu_custom_call.1} parent=43 // pred_check_branch
          %505 = sbr.rel (%p503) target = $region48
        $region47: #{tpu_custom_call.1} parent=43 // pred_region
          %s507 = ssub.s32 128, 128
          %508 = vsyncadd %s499, %s507
          %s509 = smul.addr %s21, 128
          %s510 = scalar_lea.hbm %s6, %s509
          %s512 = sshll.u32 %s502, 4
          %s513 = int_to_ptr.vmem [resolvable:$true] %s512
          %515 = dma.vmem_to_hbm [thread:$0]  %s513, 128, %s510, %s499
        $region48: #{tpu_custom_call.1} parent=43 // pred_fallthru
          _
      $region44: #{tpu_custom_call.1} parent=5 // pred_fallthru
        _
      %p516 = scmp.le.s32.totalorder 2, %s16
      // Predicated region
      $region49: #{tpu_custom_call.1} parent=5 // pred_check
        %p517 = pneg %p516
      $region50: #{tpu_custom_call.1} parent=5 // pred_check_branch
        %519 = sbr.rel (%p517) target = $region52
      $region51: #{tpu_custom_call.1} parent=5 // pred_region
        %s520 = ssub.s32 %s16, 2
        // Predicated region
        $region53: #{tpu_custom_call.1} parent=51 // pred_check
          %p521 = pneg %p176
        $region54: #{tpu_custom_call.1} parent=51 // pred_check_branch
          %523 = sbr.rel (%p521) target = $region56
        $region55: #{tpu_custom_call.1} parent=51 // pred_region
          %s524 = sand.u32 %s161, 1
          %s525 = scalar_lea.sflag [#allocation4], %s524
          %s526 = sand.u32 %s161, 1
          %s527 = smul.addr %s526, 8
          %s528 = scalar_lea.vmem [#allocation3], %s527
          %529 = dma.done %s525, 128
        $region56: #{tpu_custom_call.1} parent=51 // pred_fallthru
          _
      $region52: #{tpu_custom_call.1} parent=5 // pred_fallthru
        _
    $region6: #{tpu_custom_call.1} parent=1 // loop_footer
      %s20 = sadd.s32 1, %s16
    $region7: #{tpu_custom_call.1} parent=1 // loop_footer_branch
      %15 = sbr.rel target = $region3
    $region8: #{tpu_custom_call.1} parent=1 // loop_exit
      _
    %530 = vsyncpa [#allocation4], 1
    %s531 = scalar_lea.sflag [#allocation4], 1
    %532 = vsyncpa %s531, 1

</llo_original>
